<compile_context>
chip_gen: v5e
topology: v5e:2x2
jax: 0.10.0
libtpu: 0.0.40
codegen_flags: <defaults>
</compile_context>

<pallas_src>
import jax
import jax.numpy as jnp
import numpy as np
from jax.experimental import pallas as pl
from jax.experimental.pallas import tpu as pltpu


def fold_bn(w, b, gamma, beta, mean, var, eps=1e-5):
    """Fold eval-mode BatchNorm1d into a 1x1 conv. w: (C_in, C_out), b: (C_out,)."""
    scale = gamma / jnp.sqrt(var + eps)
    w_f = w * scale[None, :]
    b_f = (b - mean) * scale + beta
    return w_f, b_f


def _pick_group_tile(n):
    """Groups per grid step. Must divide n; last output dim is G, so it must be
    either the full n or a multiple of 128 to keep stores lane-dense."""
    if n <= 256:
        return n
    for g in (256, 128):
        if n % g == 0:
            return g
    return n  # fall back: whole n axis in one block


def pre_extraction_kernel(x_ref, wt_ref, bt_ref, w1_ref, b1_ref, w2_ref, b2_ref, o_ref):
    # x_ref block: (1, G, S, D_in) in bf16 -> flatten groups*points into rows.
    g, s, d = x_ref.shape[1], x_ref.shape[2], x_ref.shape[3]
    x = x_ref[0].reshape(g * s, d)                                           # (G*S, D) bf16

    # transfer: Conv1d(k=1) + BN(folded) + ReLU   (bf16 matmul, f32 epilogue)
    h = jnp.dot(x, wt_ref[...], preferred_element_type=jnp.float32) + bt_ref[...]
    h = jnp.maximum(h, 0.0)                                                  # (G*S, C) f32

    # ConvBNReLURes1D (groups=1, res_expansion=1)
    h1 = jnp.dot(h.astype(w1_ref.dtype), w1_ref[...],
                 preferred_element_type=jnp.float32) + b1_ref[...]
    h1 = jnp.maximum(h1, 0.0)                                                # (G*S, C) f32
    h2 = jnp.dot(h1.astype(w2_ref.dtype), w2_ref[...],
                 preferred_element_type=jnp.float32) + b2_ref[...]
    h = jnp.maximum(h2 + h, 0.0)                                             # (G*S, C) f32

    # adaptive_max_pool1d(., 1): max over the S (points) axis, then emit the
    # output already in [b, C, n] layout (transpose rides the XLU).
    pooled = jnp.max(h.reshape(g, s, -1), axis=1)                            # (G, C)
    o_ref[0] = pooled.T.astype(o_ref.dtype)                                  # (C, G)


def pre_extraction_forward(x, params):
    """x: [b, n, s, d_in] (f32 or bf16) -> [b, out_channels, n] (f32)."""
    b, n, s, d = x.shape
    wt, bt, w1, b1, w2, b2 = params
    c = wt.shape[1]
    g = _pick_group_tile(n)

    x_bf = x.astype(jnp.bfloat16)

    flops = 2 * b * n * s * (d * c + 2 * c * c)
    bytes_accessed = (b * n * s * d * 2                    # bf16 input
                      + (d * c + 2 * c * c) * 2 + 3 * c * 4  # weights + biases
                      + b * c * n * 4)                     # f32 output
    cost = pl.CostEstimate(flops=flops, transcendentals=0,
                           bytes_accessed=bytes_accessed)

    out = pl.pallas_call(
        pre_extraction_kernel,
        out_shape=jax.ShapeDtypeStruct((b, c, n), jnp.float32),
        grid_spec=pltpu.PrefetchScalarGridSpec(
            num_scalar_prefetch=0,
            grid=(b, n // g),
            in_specs=[
                pl.BlockSpec((1, g, s, d), lambda bi, ni: (bi, ni, 0, 0)),  # G groups of points
                pl.BlockSpec((d, c), lambda bi, ni: (0, 0)),                # transfer weight (bf16)
                pl.BlockSpec((1, c), lambda bi, ni: (0, 0)),                # transfer bias (f32)
                pl.BlockSpec((c, c), lambda bi, ni: (0, 0)),                # block net1 weight
                pl.BlockSpec((1, c), lambda bi, ni: (0, 0)),                # block net1 bias
                pl.BlockSpec((c, c), lambda bi, ni: (0, 0)),                # block net2 weight
                pl.BlockSpec((1, c), lambda bi, ni: (0, 0)),                # block net2 bias
            ],
            out_specs=pl.BlockSpec((1, c, g), lambda bi, ni: (bi, 0, ni)),  # [b, C, n] directly
        ),
        compiler_params=pltpu.CompilerParams(
            dimension_semantics=("parallel", "parallel"),
            vmem_limit_bytes=32 * 1024 * 1024),
        cost_estimate=cost,
    )(x_bf, wt, bt.reshape(1, c), w1, b1.reshape(1, c), w2, b2.reshape(1, c))

    return out  # already [b, C, n]


def reference(x, params):
    """Plain-JAX reference with identical (BN-folded, bf16-operand) math."""
    b, n, s, d = x.shape
    wt, bt, w1, b1, w2, b2 = params
    c = wt.shape[1]
    xb = x.astype(jnp.bfloat16).reshape(b * n, s, d)
    h = jnp.einsum('gsd,dc->gsc', xb, wt, preferred_element_type=jnp.float32) + bt
    h = jnp.maximum(h, 0.0)
    h1 = jnp.einsum('gsc,ce->gse', h.astype(jnp.bfloat16), w1,
                    preferred_element_type=jnp.float32) + b1
    h1 = jnp.maximum(h1, 0.0)
    h2 = jnp.einsum('gse,ec->gsc', h1.astype(jnp.bfloat16), w2,
                    preferred_element_type=jnp.float32) + b2
    h = jnp.maximum(h2 + h, 0.0)
    o = jnp.max(h, axis=1)                                # (b*n, C)
    return o.reshape(b, n, c).transpose(0, 2, 1)          # (b, C, n)


if __name__ == "__main__":
    # Small shapes consistent with PreExtraction(channels=4, out_channels=32, blocks=1)
    b, n, s, channels, out_channels = 2, 8, 16, 4, 32
    d_in = 3 + 2 * channels  # use_xyz=True -> 11

    key = jax.random.PRNGKey(0)
    keys = jax.random.split(key, 19)
    x = jax.random.normal(keys[0], (b, n, s, d_in), dtype=jnp.float32)

    def make_conv_bn(ks, cin, cout):
        kw, kb, kg, kbe, km, kv = ks
        w = jax.random.normal(kw, (cin, cout), jnp.float32) * 0.1
        bb = jax.random.normal(kb, (cout,), jnp.float32) * 0.1
        gamma = 1.0 + jax.random.normal(kg, (cout,), jnp.float32) * 0.1
        beta = jax.random.normal(kbe, (cout,), jnp.float32) * 0.1
        mean = jax.random.normal(km, (cout,), jnp.float32) * 0.1
        var = 1.0 + jnp.abs(jax.random.normal(kv, (cout,), jnp.float32)) * 0.1
        wf, bf = fold_bn(w, bb, gamma, beta, mean, var)
        # Weights in bf16 for the MXU; biases stay f32 for the epilogue.
        return wf.astype(jnp.bfloat16), bf.astype(jnp.float32)

    wt, bt = make_conv_bn(keys[1:7], d_in, out_channels)            # transfer
    w1, b1 = make_conv_bn(keys[7:13], out_channels, out_channels)   # block net1
    w2, b2 = make_conv_bn(keys[13:19], out_channels, out_channels)  # block net2
    params = (wt, bt, w1, b1, w2, b2)

    out = pre_extraction_forward(x, params)
    out = jax.block_until_ready(out)

    assert out.shape == (b, out_channels, n), out.shape
    ref = reference(x, params)
    np.testing.assert_allclose(np.asarray(out), np.asarray(ref), rtol=1e-2, atol=1e-2)
    print("KERNEL_OK")
</pallas_src>

<mosaic_0001>
module attributes {stable_mosaic.version = 11 : i64} {
  func.func @pre_extraction_kernel(%arg0: i32, %arg1: i32, %arg2: memref<1x8x16x11xbf16, #tpu.memory_space<vmem>>, %arg3: memref<11x32xbf16, #tpu.memory_space<vmem>>, %arg4: memref<1x32xf32, #tpu.memory_space<vmem>>, %arg5: memref<32x32xbf16, #tpu.memory_space<vmem>>, %arg6: memref<1x32xf32, #tpu.memory_space<vmem>>, %arg7: memref<32x32xbf16, #tpu.memory_space<vmem>>, %arg8: memref<1x32xf32, #tpu.memory_space<vmem>>, %arg9: memref<1x32x8xf32, #tpu.memory_space<vmem>>) attributes {dimension_semantics = [#tpu.dimension_semantics<parallel>, #tpu.dimension_semantics<parallel>], iteration_bounds = array<i64: 2, 1>, scalar_prefetch = 0 : i64, scratch_operands = 0 : i64, tpu.core_type = #tpu.core_type<tc>, window_params = [{transform_indices = @transform_0, window_bounds = array<i64: 1, 8, 16, 11>}, {pipeline_mode = #tpu.pipeline_mode<synchronous>, transform_indices = @transform_1, window_bounds = array<i64: 11, 32>}, {pipeline_mode = #tpu.pipeline_mode<synchronous>, transform_indices = @transform_2, window_bounds = array<i64: 1, 32>}, {pipeline_mode = #tpu.pipeline_mode<synchronous>, transform_indices = @transform_3, window_bounds = array<i64: 32, 32>}, {pipeline_mode = #tpu.pipeline_mode<synchronous>, transform_indices = @transform_4, window_bounds = array<i64: 1, 32>}, {pipeline_mode = #tpu.pipeline_mode<synchronous>, transform_indices = @transform_5, window_bounds = array<i64: 32, 32>}, {pipeline_mode = #tpu.pipeline_mode<synchronous>, transform_indices = @transform_6, window_bounds = array<i64: 1, 32>}, {transform_indices = @transform_7, window_bounds = array<i64: 1, 32, 8>}]} {
    %c0 = arith.constant 0 : index
    %c0_0 = arith.constant 0 : index
    %c0_1 = arith.constant 0 : index
    %c0_2 = arith.constant 0 : index
    %0 = vector.load %arg2[%c0, %c0_0, %c0_1, %c0_2] : memref<1x8x16x11xbf16, #tpu.memory_space<vmem>>, vector<1x8x16x11xbf16>
    %1 = vector.shape_cast %0 : vector<1x8x16x11xbf16> to vector<8x16x11xbf16>
    %2 = vector.shape_cast %1 : vector<8x16x11xbf16> to vector<128x11xbf16>
    %c0_3 = arith.constant 0 : index
    %c0_4 = arith.constant 0 : index
    %3 = vector.load %arg3[%c0_3, %c0_4] : memref<11x32xbf16, #tpu.memory_space<vmem>>, vector<11x32xbf16>
    %cst = arith.constant dense<0.000000e+00> : vector<128x32xf32>
    %4 = tpu.matmul %2, %3, %cst {dimension_numbers = #tpu.dot_dimension_numbers<[1], [0], [0], [1], [0, 0, 1, 1], [], []>} : vector<128x11xbf16>, vector<11x32xbf16>, vector<128x32xf32> -> vector<128x32xf32>
    %c0_5 = arith.constant 0 : index
    %c0_6 = arith.constant 0 : index
    %5 = vector.load %arg4[%c0_5, %c0_6] : memref<1x32xf32, #tpu.memory_space<vmem>>, vector<1x32xf32>
    %6 = vector.broadcast %5 : vector<1x32xf32> to vector<128x32xf32>
    %7 = arith.addf %4, %6 : vector<128x32xf32>
    %cst_7 = arith.constant 0.000000e+00 : f32
    %8 = vector.broadcast %cst_7 : f32 to vector<128x32xf32>
    %9 = arith.maximumf %7, %8 : vector<128x32xf32>
    %10 = arith.truncf %9 : vector<128x32xf32> to vector<128x32xbf16>
    %c0_8 = arith.constant 0 : index
    %c0_9 = arith.constant 0 : index
    %11 = vector.load %arg5[%c0_8, %c0_9] : memref<32x32xbf16, #tpu.memory_space<vmem>>, vector<32x32xbf16>
    %cst_10 = arith.constant dense<0.000000e+00> : vector<128x32xf32>
    %12 = tpu.matmul %10, %11, %cst_10 {dimension_numbers = #tpu.dot_dimension_numbers<[1], [0], [0], [1], [0, 0, 1, 1], [], []>} : vector<128x32xbf16>, vector<32x32xbf16>, vector<128x32xf32> -> vector<128x32xf32>
    %c0_11 = arith.constant 0 : index
    %c0_12 = arith.constant 0 : index
    %13 = vector.load %arg6[%c0_11, %c0_12] : memref<1x32xf32, #tpu.memory_space<vmem>>, vector<1x32xf32>
    %14 = vector.broadcast %13 : vector<1x32xf32> to vector<128x32xf32>
    %15 = arith.addf %12, %14 : vector<128x32xf32>
    %cst_13 = arith.constant 0.000000e+00 : f32
    %16 = vector.broadcast %cst_13 : f32 to vector<128x32xf32>
    %17 = arith.maximumf %15, %16 : vector<128x32xf32>
    %18 = arith.truncf %17 : vector<128x32xf32> to vector<128x32xbf16>
    %c0_14 = arith.constant 0 : index
    %c0_15 = arith.constant 0 : index
    %19 = vector.load %arg7[%c0_14, %c0_15] : memref<32x32xbf16, #tpu.memory_space<vmem>>, vector<32x32xbf16>
    %cst_16 = arith.constant dense<0.000000e+00> : vector<128x32xf32>
    %20 = tpu.matmul %18, %19, %cst_16 {dimension_numbers = #tpu.dot_dimension_numbers<[1], [0], [0], [1], [0, 0, 1, 1], [], []>} : vector<128x32xbf16>, vector<32x32xbf16>, vector<128x32xf32> -> vector<128x32xf32>
    %c0_17 = arith.constant 0 : index
    %c0_18 = arith.constant 0 : index
    %21 = vector.load %arg8[%c0_17, %c0_18] : memref<1x32xf32, #tpu.memory_space<vmem>>, vector<1x32xf32>
    %22 = vector.broadcast %21 : vector<1x32xf32> to vector<128x32xf32>
    %23 = arith.addf %20, %22 : vector<128x32xf32>
    %24 = arith.addf %23, %9 : vector<128x32xf32>
    %cst_19 = arith.constant 0.000000e+00 : f32
    %25 = vector.broadcast %cst_19 : f32 to vector<128x32xf32>
    %26 = arith.maximumf %24, %25 : vector<128x32xf32>
    %27 = vector.shape_cast %26 : vector<128x32xf32> to vector<8x16x32xf32>
    %cst_20 = arith.constant dense<0xFF800000> : vector<8x32xf32>
    %28 = vector.multi_reduction <maximumf>, %27, %cst_20 [1] : vector<8x16x32xf32> to vector<8x32xf32>
    %29 = tpu.transpose %28, [1, 0] : vector<8x32xf32> -> vector<32x8xf32>
    %c0_21 = arith.constant 0 : index
    %c0_22 = arith.constant 0 : index
    %c0_23 = arith.constant 0 : index
    %30 = vector.load %arg9[%c0_21, %c0_22, %c0_23] : memref<1x32x8xf32, #tpu.memory_space<vmem>>, vector<1x32x8xf32>
    %31 = vector.shape_cast %30 : vector<1x32x8xf32> to vector<32x8xf32>
    %32 = vector.shape_cast %29 : vector<32x8xf32> to vector<1x32x8xf32>
    tpu.vector_store %arg9[%c0_21, %c0_22, %c0_23], %32 {strides = array<i32>} : memref<1x32x8xf32, #tpu.memory_space<vmem>>, vector<1x32x8xf32>,
    return
  }
  func.func @transform_0(%arg0: i32, %arg1: i32) -> (i32, i32, i32, i32) {
    %c0_i32 = arith.constant 0 : i32
    %c0_i32_0 = arith.constant 0 : i32
    %c0_i32_1 = arith.constant 0 : i32
    return %arg0, %arg1, %c0_i32, %c0_i32_0 : i32, i32, i32, i32
  }
  func.func @transform_1(%arg0: i32, %arg1: i32) -> (i32, i32) {
    %c0_i32 = arith.constant 0 : i32
    %c0_i32_0 = arith.constant 0 : i32
    %c0_i32_1 = arith.constant 0 : i32
    return %c0_i32, %c0_i32_0 : i32, i32
  }
  func.func @transform_2(%arg0: i32, %arg1: i32) -> (i32, i32) {
    %c0_i32 = arith.constant 0 : i32
    %c0_i32_0 = arith.constant 0 : i32
    %c0_i32_1 = arith.constant 0 : i32
    return %c0_i32, %c0_i32_0 : i32, i32
  }
  func.func @transform_3(%arg0: i32, %arg1: i32) -> (i32, i32) {
    %c0_i32 = arith.constant 0 : i32
    %c0_i32_0 = arith.constant 0 : i32
    %c0_i32_1 = arith.constant 0 : i32
    return %c0_i32, %c0_i32_0 : i32, i32
  }
  func.func @transform_4(%arg0: i32, %arg1: i32) -> (i32, i32) {
    %c0_i32 = arith.constant 0 : i32
    %c0_i32_0 = arith.constant 0 : i32
    %c0_i32_1 = arith.constant 0 : i32
    return %c0_i32, %c0_i32_0 : i32, i32
  }
  func.func @transform_5(%arg0: i32, %arg1: i32) -> (i32, i32) {
    %c0_i32 = arith.constant 0 : i32
    %c0_i32_0 = arith.constant 0 : i32
    %c0_i32_1 = arith.constant 0 : i32
    return %c0_i32, %c0_i32_0 : i32, i32
  }
  func.func @transform_6(%arg0: i32, %arg1: i32) -> (i32, i32) {
    %c0_i32 = arith.constant 0 : i32
    %c0_i32_0 = arith.constant 0 : i32
    %c0_i32_1 = arith.constant 0 : i32
    return %c0_i32, %c0_i32_0 : i32, i32
  }
  func.func @transform_7(%arg0: i32, %arg1: i32) -> (i32, i32, i32) {
    %c0_i32 = arith.constant 0 : i32
    %c0_i32_0 = arith.constant 0 : i32
    return %arg0, %c0_i32, %arg1 : i32, i32, i32
  }
}

</mosaic_0001>

<llo_original>
// kernel: tpu_custom_call.1
$region0: #{tpu_custom_call.1}
  #allocation0 [shape = 'u32[]', space=smem, size = 0x4, offset = 0x4, fixed_abs, tag = 'smem constant byte address 0x4 - core index']
  #allocation1 [shape = 'u32[72,128]{1,0:T(1,128)}', space=vmem, size = 0x9000, scoped, tag = 'internal scratch']
  %s0 = inlined_call_operand.vmem [shape: bf16[2,8,16,11], index: 0, kind: input, shape index: {}]
  %s1 = inlined_call_operand.vmem [shape: bf16[11,32], index: 1, kind: input, shape index: {}]
  %s2 = inlined_call_operand.vmem [shape: f32[1,32], index: 2, kind: input, shape index: {}]
  %s3 = inlined_call_operand.vmem [shape: bf16[32,32], index: 3, kind: input, shape index: {}]
  %s4 = inlined_call_operand.vmem [shape: f32[1,32], index: 4, kind: input, shape index: {}]
  %s5 = inlined_call_operand.vmem [shape: bf16[32,32], index: 5, kind: input, shape index: {}]
  %s6 = inlined_call_operand.vmem [shape: f32[1,32], index: 6, kind: input, shape index: {}]
  %s7 = inlined_call_operand.vmem [shape: f32[2,32,8], index: 7, kind: output, shape index: {}]
  %s8 = sld [smem:[#allocation0]]
  $region61: #{tpu_custom_call.1} parent=0
    _
  %s10 = ssub.s32 1, %s8
  %s11 = scalar_select 0, %s10, %s8
  loop: start=0, step=1, limit=4
  $region2: #{tpu_custom_call.1} parent=0 // loop_pre_header
    _
  $region3: #{tpu_custom_call.1} parent=0 // loop_header
    %s13 = sphi 0, %s17
    %p14 = scmp.ge.s32.totalorder %s13, 4
    %s20 = sphi 0, %s32
    %s21 = sphi 0, %s28
    %s22 = sphi 0, %s20
    %s23 = sphi 0, %s21
    %s24 = sphi 0, %s22
    %s25 = sphi 0, %s23
    %s37 = sphi 0, %s39
    %s40 = sphi 0, %s37
    %s41 = sphi 0, %s40
    %s57 = sphi 0, %s41
    %s61 = sphi 0, %s61
    %s63 = sphi 0, %s61
    %s64 = sphi 0, %s63
    %s78 = sphi 0, %s64
    %s82 = sphi 0, %s82
    %s84 = sphi 0, %s82
    %s85 = sphi 0, %s84
    %s99 = sphi 0, %s85
    %s103 = sphi 0, %s103
    %s105 = sphi 0, %s103
    %s106 = sphi 0, %s105
    %s120 = sphi 0, %s106
    %s124 = sphi 0, %s124
    %s126 = sphi 0, %s124
    %s127 = sphi 0, %s126
    %s141 = sphi 0, %s127
    %s145 = sphi 0, %s145
    %s147 = sphi 0, %s145
    %s148 = sphi 0, %s147
    %s162 = sphi 0, %s148
    %s166 = sphi 0, %s166
    %s168 = sphi 0, %s166
    %s169 = sphi 0, %s168
    %s183 = sphi 0, %s169
    %s191 = sphi 0, %s193
    %s194 = sphi 0, %s191
    %s195 = sphi 0, %s194
    %s211 = sphi 0, %s195
  $region4: #{tpu_custom_call.1} parent=0 // loop_header_branch
    %16 = sbr.rel (%p14) target = $region8
  $region5: #{tpu_custom_call.1} parent=0 // loop_body
    %s18 = ssub.s32 %s13, 1
    %s19 = ssub.s32 %s13, 2
    %s26 = sadd.s32 1, %s21
    %p27 = scmp.ge.s32.totalorder %s26, 1
    %s28 = scalar_select %p27, 0, %s26
    %s29 = sadd.s32 1, %s20
    %s30 = scalar_select %p27, %s29, %s20
    %p31 = scmp.ge.s32.totalorder %s30, 2
    %s32 = scalar_select %p31, 0, %s30
    %s33 = ssub.s32 %s20, %s32
    %s34 = ssub.s32 %s21, %s28
    %s35 = sor.u32 %s33, %s34
    %p36 = scmp.eq.s32.totalorder %s35, 0
    %s38 = sadd.s32 %s37, 1
    %s39 = scalar_select %p36, %s37, %s38
    %p42 = pneg %p36
    %p43 = scmp.eq.s32.totalorder %s13, 1
    %p44 = por %p42, %p43
    %p45 = scmp.ne.s32.totalorder %s37, %s40
    %p46 = scmp.eq.s32.totalorder %s13, 0
    %p47 = por %p45, %p46
    %p48 = scmp.ne.s32.totalorder %s37, %s40
    %p49 = scmp.eq.s32.totalorder %s18, 1
    %p50 = por %p48, %p49
    %p51 = scmp.ne.s32.totalorder %s40, %s41
    %p52 = scmp.eq.s32.totalorder %s18, 0
    %p53 = por %p51, %p52
    %p54 = scmp.ne.s32.totalorder %s40, %s41
    %p55 = scmp.eq.s32.totalorder %s19, 1
    %p56 = por %p54, %p55
    %p58 = scmp.ne.s32.totalorder %s41, %s57
    %p59 = scmp.eq.s32.totalorder %s19, 0
    %p60 = por %p58, %p59
    %s62 = sadd.s32 %s61, 1
    %p65 = scmp.eq.s32.totalorder %s13, 1
    %p66 = scmp.ne.s32.totalorder %s61, %s63
    %p67 = scmp.eq.s32.totalorder %s13, 0
    %p68 = por %p66, %p67
    %p69 = scmp.ne.s32.totalorder %s61, %s63
    %p70 = scmp.eq.s32.totalorder %s18, 1
    %p71 = por %p69, %p70
    %p72 = scmp.ne.s32.totalorder %s63, %s64
    %p73 = scmp.eq.s32.totalorder %s18, 0
    %p74 = por %p72, %p73
    %p75 = scmp.ne.s32.totalorder %s63, %s64
    %p76 = scmp.eq.s32.totalorder %s19, 1
    %p77 = por %p75, %p76
    %p79 = scmp.ne.s32.totalorder %s64, %s78
    %p80 = scmp.eq.s32.totalorder %s19, 0
    %p81 = por %p79, %p80
    %s83 = sadd.s32 %s82, 1
    %p86 = scmp.eq.s32.totalorder %s13, 1
    %p87 = scmp.ne.s32.totalorder %s82, %s84
    %p88 = scmp.eq.s32.totalorder %s13, 0
    %p89 = por %p87, %p88
    %p90 = scmp.ne.s32.totalorder %s82, %s84
    %p91 = scmp.eq.s32.totalorder %s18, 1
    %p92 = por %p90, %p91
    %p93 = scmp.ne.s32.totalorder %s84, %s85
    %p94 = scmp.eq.s32.totalorder %s18, 0
    %p95 = por %p93, %p94
    %p96 = scmp.ne.s32.totalorder %s84, %s85
    %p97 = scmp.eq.s32.totalorder %s19, 1
    %p98 = por %p96, %p97
    %p100 = scmp.ne.s32.totalorder %s85, %s99
    %p101 = scmp.eq.s32.totalorder %s19, 0
    %p102 = por %p100, %p101
    %s104 = sadd.s32 %s103, 1
    %p107 = scmp.eq.s32.totalorder %s13, 1
    %p108 = scmp.ne.s32.totalorder %s103, %s105
    %p109 = scmp.eq.s32.totalorder %s13, 0
    %p110 = por %p108, %p109
    %p111 = scmp.ne.s32.totalorder %s103, %s105
    %p112 = scmp.eq.s32.totalorder %s18, 1
    %p113 = por %p111, %p112
    %p114 = scmp.ne.s32.totalorder %s105, %s106
    %p115 = scmp.eq.s32.totalorder %s18, 0
    %p116 = por %p114, %p115
    %p117 = scmp.ne.s32.totalorder %s105, %s106
    %p118 = scmp.eq.s32.totalorder %s19, 1
    %p119 = por %p117, %p118
    %p121 = scmp.ne.s32.totalorder %s106, %s120
    %p122 = scmp.eq.s32.totalorder %s19, 0
    %p123 = por %p121, %p122
    %s125 = sadd.s32 %s124, 1
    %p128 = scmp.eq.s32.totalorder %s13, 1
    %p129 = scmp.ne.s32.totalorder %s124, %s126
    %p130 = scmp.eq.s32.totalorder %s13, 0
    %p131 = por %p129, %p130
    %p132 = scmp.ne.s32.totalorder %s124, %s126
    %p133 = scmp.eq.s32.totalorder %s18, 1
    %p134 = por %p132, %p133
    %p135 = scmp.ne.s32.totalorder %s126, %s127
    %p136 = scmp.eq.s32.totalorder %s18, 0
    %p137 = por %p135, %p136
    %p138 = scmp.ne.s32.totalorder %s126, %s127
    %p139 = scmp.eq.s32.totalorder %s19, 1
    %p140 = por %p138, %p139
    %p142 = scmp.ne.s32.totalorder %s127, %s141
    %p143 = scmp.eq.s32.totalorder %s19, 0
    %p144 = por %p142, %p143
    %s146 = sadd.s32 %s145, 1
    %p149 = scmp.eq.s32.totalorder %s13, 1
    %p150 = scmp.ne.s32.totalorder %s145, %s147
    %p151 = scmp.eq.s32.totalorder %s13, 0
    %p152 = por %p150, %p151
    %p153 = scmp.ne.s32.totalorder %s145, %s147
    %p154 = scmp.eq.s32.totalorder %s18, 1
    %p155 = por %p153, %p154
    %p156 = scmp.ne.s32.totalorder %s147, %s148
    %p157 = scmp.eq.s32.totalorder %s18, 0
    %p158 = por %p156, %p157
    %p159 = scmp.ne.s32.totalorder %s147, %s148
    %p160 = scmp.eq.s32.totalorder %s19, 1
    %p161 = por %p159, %p160
    %p163 = scmp.ne.s32.totalorder %s148, %s162
    %p164 = scmp.eq.s32.totalorder %s19, 0
    %p165 = por %p163, %p164
    %s167 = sadd.s32 %s166, 1
    %p170 = scmp.eq.s32.totalorder %s13, 1
    %p171 = scmp.ne.s32.totalorder %s166, %s168
    %p172 = scmp.eq.s32.totalorder %s13, 0
    %p173 = por %p171, %p172
    %p174 = scmp.ne.s32.totalorder %s166, %s168
    %p175 = scmp.eq.s32.totalorder %s18, 1
    %p176 = por %p174, %p175
    %p177 = scmp.ne.s32.totalorder %s168, %s169
    %p178 = scmp.eq.s32.totalorder %s18, 0
    %p179 = por %p177, %p178
    %p180 = scmp.ne.s32.totalorder %s168, %s169
    %p181 = scmp.eq.s32.totalorder %s19, 1
    %p182 = por %p180, %p181
    %p184 = scmp.ne.s32.totalorder %s169, %s183
    %p185 = scmp.eq.s32.totalorder %s19, 0
    %p186 = por %p184, %p185
    %s187 = ssub.s32 %s20, %s32
    %s188 = ssub.s32 %s21, %s28
    %s189 = sor.u32 %s187, %s188
    %p190 = scmp.eq.s32.totalorder %s189, 0
    %s192 = sadd.s32 %s191, 1
    %s193 = scalar_select %p190, %s191, %s192
    %p196 = pneg %p190
    %p197 = scmp.eq.s32.totalorder %s13, 1
    %p198 = por %p196, %p197
    %p199 = scmp.ne.s32.totalorder %s191, %s194
    %p200 = scmp.eq.s32.totalorder %s13, 0
    %p201 = por %p199, %p200
    %p202 = scmp.ne.s32.totalorder %s191, %s194
    %p203 = scmp.eq.s32.totalorder %s18, 1
    %p204 = por %p202, %p203
    %p205 = scmp.ne.s32.totalorder %s194, %s195
    %p206 = scmp.eq.s32.totalorder %s18, 0
    %p207 = por %p205, %p206
    %p208 = scmp.ne.s32.totalorder %s194, %s195
    %p209 = scmp.eq.s32.totalorder %s19, 1
    %p210 = por %p208, %p209
    %p212 = scmp.ne.s32.totalorder %s195, %s211
    %p213 = scmp.eq.s32.totalorder %s19, 0
    %p214 = por %p212, %p213
    %p215 = scmp.le.s32.totalorder 1, %s13
    %p216 = scmp.lt.s32.totalorder %s13, 3
    %p217 = pnand %p215, %p216
    %p218 = pneg %p217
    // Predicated region
    $region9: #{tpu_custom_call.1} parent=5 // pred_check
      _
    $region10: #{tpu_custom_call.1} parent=5 // pred_check_branch
      %220 = sbr.rel (%p217) target = $region12
    $region11: #{tpu_custom_call.1} parent=5 // pred_region
      %s221 = ssub.s32 %s13, 1
      // Predicated region
      $region13: #{tpu_custom_call.1} parent=11 // pred_check
        %p222 = pneg %p74
      $region14: #{tpu_custom_call.1} parent=11 // pred_check_branch
        %224 = sbr.rel (%p222) target = $region16
      $region15: #{tpu_custom_call.1} parent=11 // pred_region
        _
      $region16: #{tpu_custom_call.1} parent=11 // pred_fallthru
        _
      // Predicated region
      $region17: #{tpu_custom_call.1} parent=11 // pred_check
        %p225 = pneg %p95
      $region18: #{tpu_custom_call.1} parent=11 // pred_check_branch
        %227 = sbr.rel (%p225) target = $region20
      $region19: #{tpu_custom_call.1} parent=11 // pred_region
        _
      $region20: #{tpu_custom_call.1} parent=11 // pred_fallthru
        _
      // Predicated region
      $region21: #{tpu_custom_call.1} parent=11 // pred_check
        %p228 = pneg %p116
      $region22: #{tpu_custom_call.1} parent=11 // pred_check_branch
        %230 = sbr.rel (%p228) target = $region24
      $region23: #{tpu_custom_call.1} parent=11 // pred_region
        _
      $region24: #{tpu_custom_call.1} parent=11 // pred_fallthru
        _
      // Predicated region
      $region25: #{tpu_custom_call.1} parent=11 // pred_check
        %p231 = pneg %p137
      $region26: #{tpu_custom_call.1} parent=11 // pred_check_branch
        %233 = sbr.rel (%p231) target = $region28
      $region27: #{tpu_custom_call.1} parent=11 // pred_region
        _
      $region28: #{tpu_custom_call.1} parent=11 // pred_fallthru
        _
      // Predicated region
      $region29: #{tpu_custom_call.1} parent=11 // pred_check
        %p234 = pneg %p158
      $region30: #{tpu_custom_call.1} parent=11 // pred_check_branch
        %236 = sbr.rel (%p234) target = $region32
      $region31: #{tpu_custom_call.1} parent=11 // pred_region
        _
      $region32: #{tpu_custom_call.1} parent=11 // pred_fallthru
        _
      // Predicated region
      $region33: #{tpu_custom_call.1} parent=11 // pred_check
        %p237 = pneg %p179
      $region34: #{tpu_custom_call.1} parent=11 // pred_check_branch
        %239 = sbr.rel (%p237) target = $region36
      $region35: #{tpu_custom_call.1} parent=11 // pred_region
        _
      $region36: #{tpu_custom_call.1} parent=11 // pred_fallthru
        _
    $region12: #{tpu_custom_call.1} parent=5 // pred_fallthru
      _
    %p240 = scmp.lt.s32.totalorder %s13, 2
    // Predicated region
    $region37: #{tpu_custom_call.1} parent=5 // pred_check
      %p241 = pneg %p240
    $region38: #{tpu_custom_call.1} parent=5 // pred_check_branch
      %243 = sbr.rel (%p241) target = $region40
    $region39: #{tpu_custom_call.1} parent=5 // pred_region
      // Predicated region
      $region41: #{tpu_custom_call.1} parent=39 // pred_check
        %p244 = pneg %p47
      $region42: #{tpu_custom_call.1} parent=39 // pred_check_branch
        %246 = sbr.rel (%p244) target = $region44
      $region43: #{tpu_custom_call.1} parent=39 // pred_region
        %s247 = smul.u32 8, %s21
        %p248 = scmp.lt.s32.totalorder %s20, 1
        %s249 = scalar_select %p248, %s20, 1
        %p250 = scmp.lt.s32.totalorder %s247, 7
        %s251 = scalar_select %p250, %s247, 7
        %s252 = smul.addr %s251, 2
        %s253 = smul.addr %s249, 16
        %s254 = sadd.s32 %s252, %s253
        %s255 = smul.addr %s254, 4
        %s256 = scalar_lea.vmem %s0, %s255
        %s257 = smul.u32 8, %s21
      $region44: #{tpu_custom_call.1} parent=39 // pred_fallthru
        _
    $region40: #{tpu_custom_call.1} parent=5 // pred_fallthru
      _
    %p258 = scmp.le.s32.totalorder 1, %s13
    %p259 = scmp.lt.s32.totalorder %s13, 3
    %p260 = pnand %p258, %p259
    %p261 = pneg %p260
    // Predicated region
    $region45: #{tpu_custom_call.1} parent=5 // pred_check
      _
    $region46: #{tpu_custom_call.1} parent=5 // pred_check_branch
      %263 = sbr.rel (%p260) target = $region48
    $region47: #{tpu_custom_call.1} parent=5 // pred_region
      %s264 = ssub.s32 %s13, 1
      %s265 = smul.u32 8, %s23
      %p266 = scmp.lt.s32.totalorder %s22, 1
      %s267 = scalar_select %p266, %s22, 1
      %p268 = scmp.lt.s32.totalorder %s265, 7
      %s269 = scalar_select %p268, %s265, 7
      %s270 = smul.addr %s269, 2
      %s271 = smul.addr %s267, 16
      %s272 = sadd.s32 %s270, %s271
      %s273 = smul.addr %s272, 4
      %s274 = scalar_lea.vmem %s0, %s273
      %p275 = pneg %p53
      %p276 = pneg %p50
      %p277 = pneg %p74
      %p278 = pneg %p71
      %p279 = pneg %p95
      %p280 = pneg %p92
      %p281 = pneg %p116
      %p282 = pneg %p113
      %p283 = pneg %p137
      %p284 = pneg %p134
      %p285 = pneg %p158
      %p286 = pneg %p155
      %p287 = pneg %p179
      %p288 = pneg %p176
      %p289 = pneg %p207
      %p290 = pneg %p204
      %p291 = scmp.lt.s32.totalorder %s22, 1
      %s292 = scalar_select %p291, %s22, 1
      %p293 = scmp.lt.s32.totalorder %s23, 0
      %s294 = scalar_select %p293, %s23, 0
      %s295 = smul.addr %s292, 4
      %s296 = sadd.s32 %s294, %s295
      %s297 = smul.addr %s296, 8
      %s298 = scalar_lea.vmem %s7, %s297
      %s299 = smul.u32 8, %s23
      %p300 = scmp.lt.s32.totalorder %s22, 1
      %s301 = scalar_select %p300, %s22, 1
      %p302 = scmp.lt.s32.totalorder %s299, 7
      %s303 = scalar_select %p302, %s299, 7
      %s304 = smul.addr %s303, 2
      %s305 = smul.addr %s301, 16
      %s306 = sadd.s32 %s304, %s305
      %s307 = smul.addr %s306, 4
      %s308 = scalar_lea.vmem %s0, %s307
      %s309 = smul.u32 8, %s23
      %p310 = scmp.lt.s32.totalorder %s22, 1
      %s311 = scalar_select %p310, %s22, 1
      %p312 = scmp.lt.s32.totalorder %s23, 0
      %s313 = scalar_select %p312, %s23, 0
      %s314 = smul.addr %s311, 4
      %s315 = sadd.s32 %s313, %s314
      %s316 = smul.addr %s315, 8
      %s317 = scalar_lea.vmem %s7, %s316
      %v319 = vld [vmem:[%s308] sm:$0xf]
      %v320 = vld [vmem:[%s308 + $0x4] sm:$0xf]
      %v321 = vld [vmem:[%s308 + $0x8] sm:$0xf]
      %v322 = vld [vmem:[%s308 + $0xc] sm:$0xf]
      %v323 = vld [vmem:[%s308 + $0x10] sm:$0xf]
      %v324 = vld [vmem:[%s308 + $0x14] sm:$0xf]
      %v325 = vld [vmem:[%s308 + $0x18] sm:$0xf]
      %v326 = vld [vmem:[%s308 + $0x1c] sm:$0xf]
      %v327 = vld [vmem:[%s308 + $0x20] sm:$0xf]
      %v328 = vld [vmem:[%s308 + $0x24] sm:$0xf]
      %v329 = vld [vmem:[%s308 + $0x28] sm:$0xf]
      %v330 = vld [vmem:[%s308 + $0x2c] sm:$0xf]
      %v331 = vld [vmem:[%s308 + $0x30] sm:$0xf]
      %v332 = vld [vmem:[%s308 + $0x34] sm:$0xf]
      %v333 = vld [vmem:[%s308 + $0x38] sm:$0xf]
      %v334 = vld [vmem:[%s308 + $0x3c] sm:$0xf]
      %v335 = vld [vmem:[%s1] sm:$0xf]
      %v336 = vld [vmem:[%s1 + $0x4] sm:$0x3]
      %v337 = vld [vmem:[%s2] sm:$0x1]
      %v339 = vperm.slane %v337, 0
      %v357 = vunpack.c.l.b16 %v319
      %v358 = vunpack.c.l.b16 %v320
      %v359 = vunpack.c.l.b16 %v321
      %v360 = vunpack.c.l.b16 %v322
      %v361 = vunpack.c.l.b16 %v323
      %v362 = vunpack.c.l.b16 %v324
      %v363 = vunpack.c.l.b16 %v325
      %v364 = vunpack.c.l.b16 %v326
      %v365 = vunpack.c.l.b16 %v327
      %v366 = vunpack.c.l.b16 %v328
      %v367 = vunpack.c.l.b16 %v329
      %v368 = vunpack.c.l.b16 %v330
      %v369 = vunpack.c.l.b16 %v331
      %v370 = vunpack.c.l.b16 %v332
      %v371 = vunpack.c.l.b16 %v333
      %v372 = vunpack.c.l.b16 %v334
      %v373 = vpack.c.b16 %v358, %v357
      %v374 = vpack.c.b16 %v360, %v359
      %v375 = vpack.c.b16 %v362, %v361
      %v376 = vpack.c.b16 %v364, %v363
      %v377 = vpack.c.b16 %v366, %v365
      %v378 = vpack.c.b16 %v368, %v367
      %v379 = vpack.c.b16 %v370, %v369
      %v380 = vpack.c.b16 %v372, %v371
      %v383 = vunpack.c.l.b16 %v335
      %v384 = vunpack.c.l.b16 %v336
      %v385 = vpack.c.b16 %v384, %v383
      %vm386 = vcmask 89088
      %v388 = vsel %vm386, %v373, 0
      %v391 = vsel %vm386, %v374, 0
      %v394 = vsel %vm386, %v375, 0
      %v397 = vsel %vm386, %v376, 0
      %v400 = vsel %vm386, %v377, 0
      %v403 = vsel %vm386, %v378, 0
      %v406 = vsel %vm386, %v379, 0
      %v409 = vsel %vm386, %v380, 0
      %vm411 = vcmask 1044480
      %vm412 = vcmask 1045504
      %v413 = vsel %vm411, 4294967295, 65535
      %v414 = vsel %vm412, %v413, 0
      %v416 = vand.u32 %v385, %v414
      %418 = vmatpush.bf16.msra.mxu0 0
      %419 = vmatpush.bf16.msra.mxu0 0
      %420 = vmatpush.bf16.msra.mxu0 0
      %421 = vmatpush.bf16.msra.mxu0 0
      %422 = vmatpush.bf16.msra.mxu0 0
      %423 = vmatpush.bf16.msra.mxu0 0
      %424 = vmatpush.bf16.msra.mxu0 0
      %425 = vmatpush.bf16.msra.mxu0 %v416
      %426 = vmatmul.bf16.gmra.mxu0 %v388
      %v427 = vpop.f32.mrf.mxu0
      %v428 = vadd.f32 %v339, %v427
      %v429 = vpop.f32.mrf.mxu0
      %v430 = vadd.f32 %v339, %v429
      %431 = vmatmul.bf16.gmra.mxu0 %v391
      %v432 = vpop.f32.mrf.mxu0
      %v433 = vadd.f32 %v339, %v432
      %v434 = vpop.f32.mrf.mxu0
      %v435 = vadd.f32 %v339, %v434
      %436 = vmatmul.bf16.gmra.mxu0 %v394
      %v437 = vpop.f32.mrf.mxu0
      %v438 = vadd.f32 %v339, %v437
      %v439 = vpop.f32.mrf.mxu0
      %v440 = vadd.f32 %v339, %v439
      %441 = vmatmul.bf16.gmra.mxu0 %v397
      %v442 = vpop.f32.mrf.mxu0
      %v443 = vadd.f32 %v339, %v442
      %v444 = vpop.f32.mrf.mxu0
      %v445 = vadd.f32 %v339, %v444
      %446 = vmatmul.bf16.gmra.mxu0 %v400
      %v447 = vpop.f32.mrf.mxu0
      %v448 = vadd.f32 %v339, %v447
      %v449 = vpop.f32.mrf.mxu0
      %v450 = vadd.f32 %v339, %v449
      %451 = vmatmul.bf16.gmra.mxu0 %v403
      %v452 = vpop.f32.mrf.mxu0
      %v453 = vadd.f32 %v339, %v452
      %v454 = vpop.f32.mrf.mxu0
      %v455 = vadd.f32 %v339, %v454
      %456 = vmatmul.bf16.gmra.mxu0 %v406
      %v457 = vpop.f32.mrf.mxu0
      %v458 = vadd.f32 %v339, %v457
      %v459 = vpop.f32.mrf.mxu0
      %v460 = vadd.f32 %v339, %v459
      %461 = vmatmul.bf16.gmra.mxu0 %v409
      %v462 = vpop.f32.mrf.mxu0
      %v463 = vadd.f32 %v339, %v462
      %v464 = vpop.f32.mrf.mxu0
      %v465 = vadd.f32 %v339, %v464
      %466 = vdwg.mxu0
      %v467 = vmax.f32 %v428, 0.0
      %v468 = vmax.f32 %v430, 0.0
      %v469 = vmax.f32 %v433, 0.0
      %v470 = vmax.f32 %v435, 0.0
      %v471 = vmax.f32 %v438, 0.0
      %v472 = vmax.f32 %v440, 0.0
      %v473 = vmax.f32 %v443, 0.0
      %v474 = vmax.f32 %v445, 0.0
      %v475 = vmax.f32 %v448, 0.0
      %v476 = vmax.f32 %v450, 0.0
      %v477 = vmax.f32 %v453, 0.0
      %v478 = vmax.f32 %v455, 0.0
      %v479 = vmax.f32 %v458, 0.0
      %v480 = vmax.f32 %v460, 0.0
      %v481 = vmax.f32 %v463, 0.0
      %v482 = vmax.f32 %v465, 0.0
      %v483 = vpack.c.bf16 %v468, %v467
      %v484 = vpack.c.bf16 %v470, %v469
      %v485 = vpack.c.bf16 %v472, %v471
      %v486 = vpack.c.bf16 %v474, %v473
      %v487 = vpack.c.bf16 %v476, %v475
      %v488 = vpack.c.bf16 %v478, %v477
      %v489 = vpack.c.bf16 %v480, %v479
      %v490 = vpack.c.bf16 %v482, %v481
      %v491 = vld [vmem:[%s3] sm:$0xf]
      %v492 = vld [vmem:[%s3 + $0x4] sm:$0xf]
      %v493 = vld [vmem:[%s3 + $0x8] sm:$0xf]
      %v494 = vld [vmem:[%s3 + $0xc] sm:$0xf]
      %v495 = vld [vmem:[%s4] sm:$0x1]
      %v497 = vperm.slane %v495, 0
      %v503 = vunpack.c.l.b16 %v491
      %v504 = vunpack.c.l.b16 %v492
      %v505 = vunpack.c.l.b16 %v493
      %v506 = vunpack.c.l.b16 %v494
      %v507 = vpack.c.b16 %v504, %v503
      %v508 = vpack.c.b16 %v506, %v505
      %vm511 = vcmask 261120
      %v513 = vsel %vm511, %v483, 0
      %v516 = vsel %vm511, %v484, 0
      %v519 = vsel %vm511, %v485, 0
      %v522 = vsel %vm511, %v486, 0
      %v525 = vsel %vm511, %v487, 0
      %v528 = vsel %vm511, %v488, 0
      %v531 = vsel %vm511, %v489, 0
      %v534 = vsel %vm511, %v490, 0
      %536 = vmatpush.bf16.msra.mxu0 0
      %537 = vmatpush.bf16.msra.mxu0 0
      %538 = vmatpush.bf16.msra.mxu0 0
      %539 = vmatpush.bf16.msra.mxu0 0
      %540 = vmatpush.bf16.msra.mxu0 0
      %541 = vmatpush.bf16.msra.mxu0 0
      %542 = vmatpush.bf16.msra.mxu0 %v508
      %543 = vmatpush.bf16.msra.mxu0 %v507
      %544 = vmatmul.bf16.gmra.mxu0 %v513
      %v545 = vpop.f32.mrf.mxu0
      %v546 = vadd.f32 %v497, %v545
      %v547 = vpop.f32.mrf.mxu0
      %v548 = vadd.f32 %v497, %v547
      %549 = vmatmul.bf16.gmra.mxu0 %v516
      %v550 = vpop.f32.mrf.mxu0
      %v551 = vadd.f32 %v497, %v550
      %v552 = vpop.f32.mrf.mxu0
      %v553 = vadd.f32 %v497, %v552
      %554 = vmatmul.bf16.gmra.mxu0 %v519
      %v555 = vpop.f32.mrf.mxu0
      %v556 = vadd.f32 %v497, %v555
      %v557 = vpop.f32.mrf.mxu0
      %v558 = vadd.f32 %v497, %v557
      %559 = vmatmul.bf16.gmra.mxu0 %v522
      %v560 = vpop.f32.mrf.mxu0
      %v561 = vadd.f32 %v497, %v560
      %v562 = vpop.f32.mrf.mxu0
      %v563 = vadd.f32 %v497, %v562
      %564 = vmatmul.bf16.gmra.mxu0 %v525
      %v565 = vpop.f32.mrf.mxu0
      %v566 = vadd.f32 %v497, %v565
      %v567 = vpop.f32.mrf.mxu0
      %v568 = vadd.f32 %v497, %v567
      %569 = vmatmul.bf16.gmra.mxu0 %v528
      %v570 = vpop.f32.mrf.mxu0
      %v571 = vadd.f32 %v497, %v570
      %v572 = vpop.f32.mrf.mxu0
      %v573 = vadd.f32 %v497, %v572
      %574 = vmatmul.bf16.gmra.mxu0 %v531
      %v575 = vpop.f32.mrf.mxu0
      %v576 = vadd.f32 %v497, %v575
      %v577 = vpop.f32.mrf.mxu0
      %v578 = vadd.f32 %v497, %v577
      %579 = vmatmul.bf16.gmra.mxu0 %v534
      %v580 = vpop.f32.mrf.mxu0
      %v581 = vadd.f32 %v497, %v580
      %v582 = vpop.f32.mrf.mxu0
      %v583 = vadd.f32 %v497, %v582
      %584 = vdwg.mxu0
      %v585 = vmax.f32 %v546, 0.0
      %v586 = vmax.f32 %v548, 0.0
      %v587 = vmax.f32 %v551, 0.0
      %v588 = vmax.f32 %v553, 0.0
      %v589 = vmax.f32 %v556, 0.0
      %v590 = vmax.f32 %v558, 0.0
      %v591 = vmax.f32 %v561, 0.0
      %v592 = vmax.f32 %v563, 0.0
      %v593 = vmax.f32 %v566, 0.0
      %v594 = vmax.f32 %v568, 0.0
      %v595 = vmax.f32 %v571, 0.0
      %v596 = vmax.f32 %v573, 0.0
      %v597 = vmax.f32 %v576, 0.0
      %v598 = vmax.f32 %v578, 0.0
      %v599 = vmax.f32 %v581, 0.0
      %v600 = vmax.f32 %v583, 0.0
      %v601 = vpack.c.bf16 %v586, %v585
      %v602 = vpack.c.bf16 %v588, %v587
      %v603 = vpack.c.bf16 %v590, %v589
      %v604 = vpack.c.bf16 %v592, %v591
      %v605 = vpack.c.bf16 %v594, %v593
      %v606 = vpack.c.bf16 %v596, %v595
      %v607 = vpack.c.bf16 %v598, %v597
      %v608 = vpack.c.bf16 %v600, %v599
      %v609 = vld [vmem:[%s5] sm:$0xf]
      %v610 = vld [vmem:[%s5 + $0x4] sm:$0xf]
      %v611 = vld [vmem:[%s5 + $0x8] sm:$0xf]
      %v612 = vld [vmem:[%s5 + $0xc] sm:$0xf]
      %v613 = vld [vmem:[%s6] sm:$0x1]
      %v615 = vperm.slane %v613, 0
      %v621 = vunpack.c.l.b16 %v609
      %v622 = vunpack.c.l.b16 %v610
      %v623 = vunpack.c.l.b16 %v611
      %v624 = vunpack.c.l.b16 %v612
      %v625 = vpack.c.b16 %v622, %v621
      %v626 = vpack.c.b16 %v624, %v623
      %v630 = vsel %vm511, %v601, 0
      %v633 = vsel %vm511, %v602, 0
      %v636 = vsel %vm511, %v603, 0
      %v639 = vsel %vm511, %v604, 0
      %v642 = vsel %vm511, %v605, 0
      %v645 = vsel %vm511, %v606, 0
      %v648 = vsel %vm511, %v607, 0
      %v651 = vsel %vm511, %v608, 0
      %653 = vmatpush.bf16.msra.mxu0 0
      %654 = vmatpush.bf16.msra.mxu0 0
      %655 = vmatpush.bf16.msra.mxu0 0
      %656 = vmatpush.bf16.msra.mxu0 0
      %657 = vmatpush.bf16.msra.mxu0 0
      %658 = vmatpush.bf16.msra.mxu0 0
      %659 = vmatpush.bf16.msra.mxu0 %v626
      %660 = vmatpush.bf16.msra.mxu0 %v625
      %661 = vmatmul.bf16.gmra.mxu0 %v630
      %v662 = vpop.f32.mrf.mxu0
      %v663 = vadd.f32 %v615, %v662
      %v664 = vpop.f32.mrf.mxu0
      %v665 = vadd.f32 %v615, %v664
      %666 = vmatmul.bf16.gmra.mxu0 %v633
      %v667 = vpop.f32.mrf.mxu0
      %v668 = vadd.f32 %v615, %v667
      %v669 = vpop.f32.mrf.mxu0
      %v670 = vadd.f32 %v615, %v669
      %671 = vmatmul.bf16.gmra.mxu0 %v636
      %v672 = vpop.f32.mrf.mxu0
      %v673 = vadd.f32 %v615, %v672
      %v674 = vpop.f32.mrf.mxu0
      %v675 = vadd.f32 %v615, %v674
      %676 = vmatmul.bf16.gmra.mxu0 %v639
      %v677 = vpop.f32.mrf.mxu0
      %v678 = vadd.f32 %v615, %v677
      %v679 = vpop.f32.mrf.mxu0
      %v680 = vadd.f32 %v615, %v679
      %681 = vmatmul.bf16.gmra.mxu0 %v642
      %v682 = vpop.f32.mrf.mxu0
      %v683 = vadd.f32 %v615, %v682
      %v684 = vpop.f32.mrf.mxu0
      %v685 = vadd.f32 %v615, %v684
      %686 = vmatmul.bf16.gmra.mxu0 %v645
      %v687 = vpop.f32.mrf.mxu0
      %v688 = vadd.f32 %v615, %v687
      %v689 = vpop.f32.mrf.mxu0
      %v690 = vadd.f32 %v615, %v689
      %691 = vmatmul.bf16.gmra.mxu0 %v648
      %v692 = vpop.f32.mrf.mxu0
      %v693 = vadd.f32 %v615, %v692
      %v694 = vpop.f32.mrf.mxu0
      %v695 = vadd.f32 %v615, %v694
      %696 = vmatmul.bf16.gmra.mxu0 %v651
      %v697 = vpop.f32.mrf.mxu0
      %v698 = vadd.f32 %v615, %v697
      %v699 = vpop.f32.mrf.mxu0
      %v700 = vadd.f32 %v615, %v699
      %701 = vdwg.mxu0
      %v702 = vadd.f32 %v663, %v467
      %v703 = vadd.f32 %v665, %v468
      %v704 = vadd.f32 %v668, %v469
      %v705 = vadd.f32 %v670, %v470
      %v706 = vadd.f32 %v673, %v471
      %v707 = vadd.f32 %v675, %v472
      %v708 = vadd.f32 %v678, %v473
      %v709 = vadd.f32 %v680, %v474
      %v710 = vadd.f32 %v683, %v475
      %v711 = vadd.f32 %v685, %v476
      %v712 = vadd.f32 %v688, %v477
      %v713 = vadd.f32 %v690, %v478
      %v714 = vadd.f32 %v693, %v479
      %v715 = vadd.f32 %v695, %v480
      %v716 = vadd.f32 %v698, %v481
      %v717 = vadd.f32 %v700, %v482
      %v718 = vmax.f32 %v702, 0.0
      %v719 = vmax.f32 %v703, 0.0
      %v720 = vmax.f32 %v704, 0.0
      %v721 = vmax.f32 %v705, 0.0
      %v722 = vmax.f32 %v706, 0.0
      %v723 = vmax.f32 %v707, 0.0
      %v724 = vmax.f32 %v708, 0.0
      %v725 = vmax.f32 %v709, 0.0
      %v726 = vmax.f32 %v710, 0.0
      %v727 = vmax.f32 %v711, 0.0
      %v728 = vmax.f32 %v712, 0.0
      %v729 = vmax.f32 %v713, 0.0
      %v730 = vmax.f32 %v714, 0.0
      %v731 = vmax.f32 %v715, 0.0
      %v732 = vmax.f32 %v716, 0.0
      %v733 = vmax.f32 %v717, 0.0
      %v734 = vsel %vm511, %v718, -inf
      %v735 = vsel %vm511, %v719, -inf
      %v736 = vmax.f32 %v734, %v735
      %v737 = vrot.slane %v736, 4
      %v738 = vmax.f32 %v736, %v737
      %v739 = vrot.slane %v738, 2
      %v740 = vmax.f32 %v738, %v739
      %v741 = vrot.slane %v740, 1
      %v742 = vmax.f32 %v740, %v741
      %v743 = vsel %vm511, %v720, -inf
      %v744 = vsel %vm511, %v721, -inf
      %v745 = vmax.f32 %v743, %v744
      %v746 = vrot.slane %v745, 4
      %v747 = vmax.f32 %v745, %v746
      %v748 = vrot.slane %v747, 2
      %v749 = vmax.f32 %v747, %v748
      %v750 = vrot.slane %v749, 1
      %v751 = vmax.f32 %v749, %v750
      %v752 = vsel %vm511, %v722, -inf
      %v753 = vsel %vm511, %v723, -inf
      %v754 = vmax.f32 %v752, %v753
      %v755 = vrot.slane %v754, 4
      %v756 = vmax.f32 %v754, %v755
      %v757 = vrot.slane %v756, 2
      %v758 = vmax.f32 %v756, %v757
      %v759 = vrot.slane %v758, 1
      %v760 = vmax.f32 %v758, %v759
      %v761 = vsel %vm511, %v724, -inf
      %v762 = vsel %vm511, %v725, -inf
      %v763 = vmax.f32 %v761, %v762
      %v764 = vrot.slane %v763, 4
      %v765 = vmax.f32 %v763, %v764
      %v766 = vrot.slane %v765, 2
      %v767 = vmax.f32 %v765, %v766
      %v768 = vrot.slane %v767, 1
      %v769 = vmax.f32 %v767, %v768
      %v770 = vsel %vm511, %v726, -inf
      %v771 = vsel %vm511, %v727, -inf
      %v772 = vmax.f32 %v770, %v771
      %v773 = vrot.slane %v772, 4
      %v774 = vmax.f32 %v772, %v773
      %v775 = vrot.slane %v774, 2
      %v776 = vmax.f32 %v774, %v775
      %v777 = vrot.slane %v776, 1
      %v778 = vmax.f32 %v776, %v777
      %v779 = vsel %vm511, %v728, -inf
      %v780 = vsel %vm511, %v729, -inf
      %v781 = vmax.f32 %v779, %v780
      %v782 = vrot.slane %v781, 4
      %v783 = vmax.f32 %v781, %v782
      %v784 = vrot.slane %v783, 2
      %v785 = vmax.f32 %v783, %v784
      %v786 = vrot.slane %v785, 1
      %v787 = vmax.f32 %v785, %v786
      %v788 = vsel %vm511, %v730, -inf
      %v789 = vsel %vm511, %v731, -inf
      %v790 = vmax.f32 %v788, %v789
      %v791 = vrot.slane %v790, 4
      %v792 = vmax.f32 %v790, %v791
      %v793 = vrot.slane %v792, 2
      %v794 = vmax.f32 %v792, %v793
      %v795 = vrot.slane %v794, 1
      %v796 = vmax.f32 %v794, %v795
      %v797 = vsel %vm511, %v732, -inf
      %v798 = vsel %vm511, %v733, -inf
      %v799 = vmax.f32 %v797, %v798
      %v800 = vrot.slane %v799, 4
      %v801 = vmax.f32 %v799, %v800
      %v802 = vrot.slane %v801, 2
      %v803 = vmax.f32 %v801, %v802
      %v804 = vrot.slane %v803, 1
      %v805 = vmax.f32 %v803, %v804
      %vm814 = vcmask 1041409
      %v815 = vsel %vm814, %v751, %v742
      %vm816 = vcmask 1042434
      %v817 = vsel %vm816, %v760, %v815
      %vm818 = vcmask 1043459
      %v819 = vsel %vm818, %v769, %v817
      %vm820 = vcmask 1044484
      %v821 = vsel %vm820, %v778, %v819
      %vm822 = vcmask 1045509
      %v823 = vsel %vm822, %v787, %v821
      %vm824 = vcmask 1046534
      %v825 = vsel %vm824, %v796, %v823
      %vm826 = vcmask 1047559
      %v827 = vsel %vm826, %v805, %v825
      %829 = vxpose.xlu0.b32.start [1/16] %v827, 128
      %830 = vxpose.xlu0.b32.cont [2/16] 0.0, 128
      %831 = vxpose.xlu0.b32.cont [3/16] 0.0, 128
      %832 = vxpose.xlu0.b32.cont [4/16] 0.0, 128
      %833 = vxpose.xlu0.b32.cont [5/16] 0.0, 128
      %834 = vxpose.xlu0.b32.cont [6/16] 0.0, 128
      %835 = vxpose.xlu0.b32.cont [7/16] 0.0, 128
      %836 = vxpose.xlu0.b32.cont [8/16] 0.0, 128
      %837 = vxpose.xlu0.b32.cont [9/16] 0.0, 128
      %838 = vxpose.xlu0.b32.cont [10/16] 0.0, 128
      %839 = vxpose.xlu0.b32.cont [11/16] 0.0, 128
      %840 = vxpose.xlu0.b32.cont [12/16] 0.0, 128
      %841 = vxpose.xlu0.b32.cont [13/16] 0.0, 128
      %842 = vxpose.xlu0.b32.cont [14/16] 0.0, 128
      %843 = vxpose.xlu0.b32.cont [15/16] 0.0, 128
      %844 = vxpose.xlu0.b32.end [16/16] 0.0, 128
      %v845 = vpop.trf.xlu0
      %v846 = vpop.trf.xlu0
      %v847 = vpop.trf.xlu0
      %v848 = vpop.trf.xlu0
      %v849 = vpop.trf.xlu0
      %v850 = vpop.trf.xlu0
      %v851 = vpop.trf.xlu0
      %v852 = vpop.trf.xlu0
      %v853 = vpop.trf.xlu0
      %v854 = vpop.trf.xlu0
      %v855 = vpop.trf.xlu0
      %v856 = vpop.trf.xlu0
      %v857 = vpop.trf.xlu0
      %v858 = vpop.trf.xlu0
      %v859 = vpop.trf.xlu0
      %v860 = vpop.trf.xlu0
      %vm861 = vcmask 64512
      %862 = vst.msk [vmem:[%s317] sm:$0xff] %vm861, %v845
      %863 = vst.msk [vmem:[%s317 + $0x8] sm:$0xff] %vm861, %v846
      %864 = vst.msk [vmem:[%s317 + $0x10] sm:$0xff] %vm861, %v847
      %865 = vst.msk [vmem:[%s317 + $0x18] sm:$0xff] %vm861, %v848
      %p866 = scmp.lt.s32.totalorder %s22, 1
      %s867 = scalar_select %p866, %s22, 1
      %p868 = scmp.lt.s32.totalorder %s23, 0
      %s869 = scalar_select %p868, %s23, 0
      %s870 = smul.addr %s867, 4
      %s871 = sadd.s32 %s869, %s870
      %s872 = smul.addr %s871, 8
      %s873 = scalar_lea.vmem %s7, %s872
      // Predicated region
      $region49: #{tpu_custom_call.1} parent=47 // pred_check
        %p874 = pneg %p204
      $region50: #{tpu_custom_call.1} parent=47 // pred_check_branch
        %876 = sbr.rel (%p874) target = $region52
      $region51: #{tpu_custom_call.1} parent=47 // pred_region
        _
      $region52: #{tpu_custom_call.1} parent=47 // pred_fallthru
        _
    $region48: #{tpu_custom_call.1} parent=5 // pred_fallthru
      _
    %p877 = scmp.le.s32.totalorder 2, %s13
    // Predicated region
    $region53: #{tpu_custom_call.1} parent=5 // pred_check
      %p878 = pneg %p877
    $region54: #{tpu_custom_call.1} parent=5 // pred_check_branch
      %880 = sbr.rel (%p878) target = $region56
    $region55: #{tpu_custom_call.1} parent=5 // pred_region
      %s881 = ssub.s32 %s13, 2
      // Predicated region
      $region57: #{tpu_custom_call.1} parent=55 // pred_check
        %p882 = pneg %p210
      $region58: #{tpu_custom_call.1} parent=55 // pred_check_branch
        %884 = sbr.rel (%p882) target = $region60
      $region59: #{tpu_custom_call.1} parent=55 // pred_region
        %p885 = scmp.lt.s32.totalorder %s24, 1
        %s886 = scalar_select %p885, %s24, 1
        %p887 = scmp.lt.s32.totalorder %s25, 0
        %s888 = scalar_select %p887, %s25, 0
        %s889 = smul.addr %s886, 4
        %s890 = sadd.s32 %s888, %s889
        %s891 = smul.addr %s890, 8
        %s892 = scalar_lea.vmem %s7, %s891
      $region60: #{tpu_custom_call.1} parent=55 // pred_fallthru
        _
    $region56: #{tpu_custom_call.1} parent=5 // pred_fallthru
      _
  $region6: #{tpu_custom_call.1} parent=0 // loop_footer
    %s17 = sadd.s32 1, %s13
  $region7: #{tpu_custom_call.1} parent=0 // loop_footer_branch
    %12 = sbr.rel target = $region3
  $region8: #{tpu_custom_call.1} parent=0 // loop_exit
    _

</llo_original>
